<compile_context>
chip_gen: v5e
topology: v5e:2x2
jax: 0.10.0
libtpu: 0.0.40
codegen_flags: <defaults>
</compile_context>

<pallas_src>
import functools

import jax
import jax.numpy as jnp
from jax.experimental import pallas as pl
from jax.experimental.pallas import tpu as pltpu

_EPS = 1e-5
_NEG_SLOPE = 0.1


def _round_up(n, m):
    return ((n + m - 1) // m) * m


def _leaky(z):
    return jnp.where(z >= 0, z, _NEG_SLOPE * z)


def _fc_resblock_kernel(x_ref, w1_ref, w21_ref, w22_ref, bn_ref, o_ref, *,
                        real_batch, mask_rows):
    """Fused: (FC->BN->LReLU) || (FC->BN->LReLU->FC->BN->LReLU) -> add -> LReLU."""
    x = x_ref[...]            # (B_pad, F_in_pad), compute dtype (bf16 or f32)
    bn = bn_ref[...]          # (8, F_out_pad) f32: rows = g1, be1, g21, be21, g22, be22

    inv_b = 1.0 / real_batch  # static python float -> constant

    def bn_leaky(y, g, be):
        # Training-mode BatchNorm1d (biased variance, eps=1e-5) fused with
        # LeakyReLU.  One pass over y for the stats, then a single FMA.
        mean = jnp.sum(y, axis=0, keepdims=True) * inv_b
        mean_sq = jnp.sum(y * y, axis=0, keepdims=True) * inv_b
        var = mean_sq - mean * mean
        scale = g * jax.lax.rsqrt(var + _EPS)
        shift = be - mean * scale
        z = y * scale + shift
        return _leaky(z)

    # Path 1: FC -> BN -> LeakyReLU.  (Linear bias omitted on purpose: a
    # constant per-feature bias is cancelled exactly by the BN mean subtract.)
    y1 = jnp.dot(x, w1_ref[...], preferred_element_type=jnp.float32)
    x1 = bn_leaky(y1, bn[0:1, :], bn[1:2, :])

    # Path 2: FC -> BN -> LeakyReLU -> FC -> BN -> LeakyReLU.
    y21 = jnp.dot(x, w21_ref[...], preferred_element_type=jnp.float32)
    x2 = bn_leaky(y21, bn[2:3, :], bn[3:4, :])
    if mask_rows:
        # Batch-padding rows are zero in x, but become leaky(shift21) after the
        # first BN; zero them so they do not pollute the second layer's stats.
        row = jax.lax.broadcasted_iota(jnp.int32, (x2.shape[0], 1), 0)
        x2 = jnp.where(row < real_batch, x2, 0.0)
    y22 = jnp.dot(x2.astype(w22_ref.dtype), w22_ref[...],
                  preferred_element_type=jnp.float32)
    x2 = bn_leaky(y22, bn[4:5, :], bn[5:6, :])

    # Merge paths.
    o_ref[...] = _leaky(x1 + x2)


def prepare_params(params, in_features, out_features, param_dtype=jnp.bfloat16):
    """One-time packing: transpose to (in, out), pad to 128 lanes, cast.

    Biases b1/b21/b22 are intentionally NOT packed (cancelled by training-mode
    BN).  Gammas/betas are packed into a single (8, out_pad) f32 array.
    """
    in_pad = _round_up(max(in_features, 1), 128)
    out_pad = _round_up(max(out_features, 1), 128)

    def pad_w(w, rows_pad):
        # torch (out, in) -> (in, out), zero-padded, cast to compute dtype.
        wt = jnp.asarray(w, jnp.float32).T.astype(param_dtype)
        k, n = wt.shape
        return jnp.zeros((rows_pad, out_pad), param_dtype).at[:k, :n].set(wt)

    vecs = jnp.stack([
        jnp.asarray(params["g1"], jnp.float32),
        jnp.asarray(params["be1"], jnp.float32),
        jnp.asarray(params["g21"], jnp.float32),
        jnp.asarray(params["be21"], jnp.float32),
        jnp.asarray(params["g22"], jnp.float32),
        jnp.asarray(params["be22"], jnp.float32),
    ])  # (6, out_features)
    bn_pack = jnp.zeros((8, out_pad), jnp.float32).at[:6, :out_features].set(vecs)

    return {
        "w1": pad_w(params["w1"], in_pad),    # (in_pad, out_pad)
        "w21": pad_w(params["w21"], in_pad),  # (in_pad, out_pad)
        "w22": pad_w(params["w22"], out_pad), # (out_pad, out_pad)
        "bn": bn_pack,                        # (8, out_pad) f32
        "in_features": in_features,
        "out_features": out_features,
        "in_pad": in_pad,
        "out_pad": out_pad,
        "dtype": param_dtype,
    }


def _vmem_budget(b_pad, in_pad, out_pad, dtype):
    isz = jnp.dtype(dtype).itemsize
    acts = 6 * b_pad * out_pad * 4                     # f32 intermediates + output
    xin = b_pad * in_pad * isz
    wts = (2 * in_pad * out_pad + out_pad * out_pad) * isz
    need = acts + xin + wts + 8 * out_pad * 4
    # 4x headroom for compiler temporaries; cap so the request also fits
    # v7x's 64 MiB physical VMEM (v5e/v6e have 128 MiB).
    return int(min(max(4 * need, 16 * 1024 * 1024), 48 * 1024 * 1024))


def old_fc_res_block(x, prep):
    """x: (B, in_features). prep: output of prepare_params()."""
    B, f_in = x.shape
    assert f_in == prep["in_features"], (f_in, prep["in_features"])
    dtype = prep["dtype"]
    b_pad = _round_up(max(B, 1), 8)

    # Zero-pad input to (8-aligned batch, 128-aligned features), cast once.
    x_p = jnp.zeros((b_pad, prep["in_pad"]), dtype).at[:B, :f_in].set(
        x.astype(dtype))

    kernel = functools.partial(
        _fc_resblock_kernel, real_batch=B, mask_rows=(b_pad != B))

    vmem = pl.BlockSpec(memory_space=pltpu.MemorySpace.VMEM)
    out = pl.pallas_call(
        kernel,
        out_shape=jax.ShapeDtypeStruct((b_pad, prep["out_pad"]), jnp.float32),
        in_specs=[vmem] * 5,
        out_specs=vmem,
        compiler_params=pltpu.CompilerParams(
            vmem_limit_bytes=_vmem_budget(
                b_pad, prep["in_pad"], prep["out_pad"], dtype)),
    )(x_p, prep["w1"], prep["w21"], prep["w22"], prep["bn"])

    return out[:B, :prep["out_features"]]


def _reference(x, params):
    """Pure-JAX f32 reference matching the PyTorch module (training mode)."""
    def lin(y, w, b):
        return y @ jnp.asarray(w, jnp.float32).T + jnp.asarray(b, jnp.float32)

    def bn(y, g, be):
        m = jnp.mean(y, axis=0, keepdims=True)
        v = jnp.mean((y - m) ** 2, axis=0, keepdims=True)
        return (y - m) / jnp.sqrt(v + _EPS) * g + be

    x1 = _leaky(bn(lin(x, params["w1"], params["b1"]), params["g1"], params["be1"]))
    x2 = _leaky(bn(lin(x, params["w21"], params["b21"]), params["g21"], params["be21"]))
    x2 = _leaky(bn(lin(x2, params["w22"], params["b22"]), params["g22"], params["be22"]))
    return _leaky(x1 + x2)


def _init_params(key, in_features, out_features):
    """Deterministic synthetic init mimicking PyTorch Linear/BatchNorm1d."""
    ks = jax.random.split(key, 6)
    bound1 = 1.0 / jnp.sqrt(in_features)
    bound2 = 1.0 / jnp.sqrt(out_features)
    u = jax.random.uniform
    return {
        "w1": u(ks[0], (out_features, in_features), minval=-bound1, maxval=bound1),
        "b1": u(ks[1], (out_features,), minval=-bound1, maxval=bound1),
        "g1": jnp.ones((out_features,)), "be1": jnp.zeros((out_features,)),
        "w21": u(ks[2], (out_features, in_features), minval=-bound1, maxval=bound1),
        "b21": u(ks[3], (out_features,), minval=-bound1, maxval=bound1),
        "g21": jnp.ones((out_features,)), "be21": jnp.zeros((out_features,)),
        "w22": u(ks[4], (out_features, out_features), minval=-bound2, maxval=bound2),
        "b22": u(ks[5], (out_features,), minval=-bound2, maxval=bound2),
        "g22": jnp.ones((out_features,)), "be22": jnp.zeros((out_features,)),
    }


if __name__ == "__main__":
    B, in_features, out_features = 8, 16, 32
    key = jax.random.PRNGKey(0)
    kx, kp = jax.random.split(key)

    x = jax.random.normal(kx, (B, in_features), dtype=jnp.float32)
    params = _init_params(kp, in_features, out_features)
    ref = _reference(x, params)

    # f32 path: validates bias-drop + fused one-pass BN with tight tolerance.
    prep32 = prepare_params(params, in_features, out_features,
                            param_dtype=jnp.float32)
    out32 = jax.block_until_ready(old_fc_res_block(x, prep32))
    assert out32.shape == (B, out_features)
    assert jnp.allclose(out32, ref, atol=1e-3, rtol=1e-3), (
        f"f32 max abs diff {jnp.max(jnp.abs(out32 - ref))}")

    # bf16 path (default: MXU-rate matmuls, f32 accumulation): looser tolerance.
    prep16 = prepare_params(params, in_features, out_features,
                            param_dtype=jnp.bfloat16)
    out16 = jax.block_until_ready(old_fc_res_block(x, prep16))
    assert out16.shape == (B, out_features)
    assert jnp.allclose(out16, ref, atol=5e-2, rtol=5e-2), (
        f"bf16 max abs diff {jnp.max(jnp.abs(out16 - ref))}")

    print("KERNEL_OK")
</pallas_src>

<mosaic_0001>
module attributes {stable_mosaic.version = 11 : i64} {
  func.func @_fc_resblock_kernel(%arg0: memref<8x128xf32, #tpu.memory_space<vmem>>, %arg1: memref<128x128xf32, #tpu.memory_space<vmem>>, %arg2: memref<128x128xf32, #tpu.memory_space<vmem>>, %arg3: memref<128x128xf32, #tpu.memory_space<vmem>>, %arg4: memref<8x128xf32, #tpu.memory_space<vmem>>, %arg5: memref<8x128xf32, #tpu.memory_space<vmem>>) attributes {dimension_semantics = [], scalar_prefetch = 0 : i64, scratch_operands = 0 : i64, tpu.core_type = #tpu.core_type<tc>} {
    %c0 = arith.constant 0 : index
    %c0_0 = arith.constant 0 : index
    %0 = vector.load %arg0[%c0, %c0_0] : memref<8x128xf32, #tpu.memory_space<vmem>>, vector<8x128xf32>
    %c0_1 = arith.constant 0 : index
    %c0_2 = arith.constant 0 : index
    %1 = vector.load %arg4[%c0_1, %c0_2] : memref<8x128xf32, #tpu.memory_space<vmem>>, vector<8x128xf32>
    %c0_3 = arith.constant 0 : index
    %c0_4 = arith.constant 0 : index
    %2 = vector.load %arg1[%c0_3, %c0_4] : memref<128x128xf32, #tpu.memory_space<vmem>>, vector<128x128xf32>
    %cst = arith.constant dense<0.000000e+00> : vector<8x128xf32>
    %3 = tpu.matmul %0, %2, %cst {dimension_numbers = #tpu.dot_dimension_numbers<[1], [0], [0], [1], [0, 0, 1, 1], [], []>} : vector<8x128xf32>, vector<128x128xf32>, vector<8x128xf32> -> vector<8x128xf32>
    %4 = vector.extract_strided_slice %1 {offsets = [0, 0], sizes = [1, 128], strides = [1, 1]} : vector<8x128xf32> to vector<1x128xf32>
    %5 = vector.extract_strided_slice %1 {offsets = [1, 0], sizes = [1, 128], strides = [1, 1]} : vector<8x128xf32> to vector<1x128xf32>
    %cst_5 = arith.constant dense<0.000000e+00> : vector<128xf32>
    %6 = vector.multi_reduction <add>, %3, %cst_5 [0] : vector<8x128xf32> to vector<128xf32>
    %7 = vector.shape_cast %6 : vector<128xf32> to vector<1x128xf32>
    %cst_6 = arith.constant 1.250000e-01 : f32
    %8 = vector.broadcast %cst_6 : f32 to vector<1x128xf32>
    %9 = arith.mulf %7, %8 : vector<1x128xf32>
    %10 = arith.mulf %3, %3 : vector<8x128xf32>
    %cst_7 = arith.constant dense<0.000000e+00> : vector<128xf32>
    %11 = vector.multi_reduction <add>, %10, %cst_7 [0] : vector<8x128xf32> to vector<128xf32>
    %12 = vector.shape_cast %11 : vector<128xf32> to vector<1x128xf32>
    %cst_8 = arith.constant 1.250000e-01 : f32
    %13 = vector.broadcast %cst_8 : f32 to vector<1x128xf32>
    %14 = arith.mulf %12, %13 : vector<1x128xf32>
    %15 = arith.mulf %9, %9 : vector<1x128xf32>
    %16 = arith.subf %14, %15 : vector<1x128xf32>
    %cst_9 = arith.constant 9.99999974E-6 : f32
    %17 = vector.broadcast %cst_9 : f32 to vector<1x128xf32>
    %18 = arith.addf %16, %17 : vector<1x128xf32>
    %19 = math.rsqrt %18 : vector<1x128xf32>
    %20 = arith.mulf %4, %19 : vector<1x128xf32>
    %21 = arith.mulf %9, %20 : vector<1x128xf32>
    %22 = arith.subf %5, %21 : vector<1x128xf32>
    %23 = vector.broadcast %20 : vector<1x128xf32> to vector<8x128xf32>
    %24 = arith.mulf %3, %23 : vector<8x128xf32>
    %25 = vector.broadcast %22 : vector<1x128xf32> to vector<8x128xf32>
    %26 = arith.addf %24, %25 : vector<8x128xf32>
    %cst_10 = arith.constant 0.000000e+00 : f32
    %27 = vector.broadcast %cst_10 : f32 to vector<8x128xf32>
    %28 = arith.cmpf oge, %26, %27 : vector<8x128xf32>
    %cst_11 = arith.constant 1.000000e-01 : f32
    %29 = vector.broadcast %cst_11 : f32 to vector<8x128xf32>
    %30 = arith.mulf %29, %26 : vector<8x128xf32>
    %31 = arith.select %28, %26, %30 : vector<8x128xi1>, vector<8x128xf32>
    %c0_12 = arith.constant 0 : index
    %c0_13 = arith.constant 0 : index
    %32 = vector.load %arg2[%c0_12, %c0_13] : memref<128x128xf32, #tpu.memory_space<vmem>>, vector<128x128xf32>
    %cst_14 = arith.constant dense<0.000000e+00> : vector<8x128xf32>
    %33 = tpu.matmul %0, %32, %cst_14 {dimension_numbers = #tpu.dot_dimension_numbers<[1], [0], [0], [1], [0, 0, 1, 1], [], []>} : vector<8x128xf32>, vector<128x128xf32>, vector<8x128xf32> -> vector<8x128xf32>
    %34 = vector.extract_strided_slice %1 {offsets = [2, 0], sizes = [1, 128], strides = [1, 1]} : vector<8x128xf32> to vector<1x128xf32>
    %35 = vector.extract_strided_slice %1 {offsets = [3, 0], sizes = [1, 128], strides = [1, 1]} : vector<8x128xf32> to vector<1x128xf32>
    %cst_15 = arith.constant dense<0.000000e+00> : vector<128xf32>
    %36 = vector.multi_reduction <add>, %33, %cst_15 [0] : vector<8x128xf32> to vector<128xf32>
    %37 = vector.shape_cast %36 : vector<128xf32> to vector<1x128xf32>
    %cst_16 = arith.constant 1.250000e-01 : f32
    %38 = vector.broadcast %cst_16 : f32 to vector<1x128xf32>
    %39 = arith.mulf %37, %38 : vector<1x128xf32>
    %40 = arith.mulf %33, %33 : vector<8x128xf32>
    %cst_17 = arith.constant dense<0.000000e+00> : vector<128xf32>
    %41 = vector.multi_reduction <add>, %40, %cst_17 [0] : vector<8x128xf32> to vector<128xf32>
    %42 = vector.shape_cast %41 : vector<128xf32> to vector<1x128xf32>
    %cst_18 = arith.constant 1.250000e-01 : f32
    %43 = vector.broadcast %cst_18 : f32 to vector<1x128xf32>
    %44 = arith.mulf %42, %43 : vector<1x128xf32>
    %45 = arith.mulf %39, %39 : vector<1x128xf32>
    %46 = arith.subf %44, %45 : vector<1x128xf32>
    %cst_19 = arith.constant 9.99999974E-6 : f32
    %47 = vector.broadcast %cst_19 : f32 to vector<1x128xf32>
    %48 = arith.addf %46, %47 : vector<1x128xf32>
    %49 = math.rsqrt %48 : vector<1x128xf32>
    %50 = arith.mulf %34, %49 : vector<1x128xf32>
    %51 = arith.mulf %39, %50 : vector<1x128xf32>
    %52 = arith.subf %35, %51 : vector<1x128xf32>
    %53 = vector.broadcast %50 : vector<1x128xf32> to vector<8x128xf32>
    %54 = arith.mulf %33, %53 : vector<8x128xf32>
    %55 = vector.broadcast %52 : vector<1x128xf32> to vector<8x128xf32>
    %56 = arith.addf %54, %55 : vector<8x128xf32>
    %cst_20 = arith.constant 0.000000e+00 : f32
    %57 = vector.broadcast %cst_20 : f32 to vector<8x128xf32>
    %58 = arith.cmpf oge, %56, %57 : vector<8x128xf32>
    %cst_21 = arith.constant 1.000000e-01 : f32
    %59 = vector.broadcast %cst_21 : f32 to vector<8x128xf32>
    %60 = arith.mulf %59, %56 : vector<8x128xf32>
    %61 = arith.select %58, %56, %60 : vector<8x128xi1>, vector<8x128xf32>
    %c0_22 = arith.constant 0 : index
    %c0_23 = arith.constant 0 : index
    %62 = vector.load %arg3[%c0_22, %c0_23] : memref<128x128xf32, #tpu.memory_space<vmem>>, vector<128x128xf32>
    %cst_24 = arith.constant dense<0.000000e+00> : vector<8x128xf32>
    %63 = tpu.matmul %61, %62, %cst_24 {dimension_numbers = #tpu.dot_dimension_numbers<[1], [0], [0], [1], [0, 0, 1, 1], [], []>} : vector<8x128xf32>, vector<128x128xf32>, vector<8x128xf32> -> vector<8x128xf32>
    %64 = vector.extract_strided_slice %1 {offsets = [4, 0], sizes = [1, 128], strides = [1, 1]} : vector<8x128xf32> to vector<1x128xf32>
    %65 = vector.extract_strided_slice %1 {offsets = [5, 0], sizes = [1, 128], strides = [1, 1]} : vector<8x128xf32> to vector<1x128xf32>
    %cst_25 = arith.constant dense<0.000000e+00> : vector<128xf32>
    %66 = vector.multi_reduction <add>, %63, %cst_25 [0] : vector<8x128xf32> to vector<128xf32>
    %67 = vector.shape_cast %66 : vector<128xf32> to vector<1x128xf32>
    %cst_26 = arith.constant 1.250000e-01 : f32
    %68 = vector.broadcast %cst_26 : f32 to vector<1x128xf32>
    %69 = arith.mulf %67, %68 : vector<1x128xf32>
    %70 = arith.mulf %63, %63 : vector<8x128xf32>
    %cst_27 = arith.constant dense<0.000000e+00> : vector<128xf32>
    %71 = vector.multi_reduction <add>, %70, %cst_27 [0] : vector<8x128xf32> to vector<128xf32>
    %72 = vector.shape_cast %71 : vector<128xf32> to vector<1x128xf32>
    %cst_28 = arith.constant 1.250000e-01 : f32
    %73 = vector.broadcast %cst_28 : f32 to vector<1x128xf32>
    %74 = arith.mulf %72, %73 : vector<1x128xf32>
    %75 = arith.mulf %69, %69 : vector<1x128xf32>
    %76 = arith.subf %74, %75 : vector<1x128xf32>
    %cst_29 = arith.constant 9.99999974E-6 : f32
    %77 = vector.broadcast %cst_29 : f32 to vector<1x128xf32>
    %78 = arith.addf %76, %77 : vector<1x128xf32>
    %79 = math.rsqrt %78 : vector<1x128xf32>
    %80 = arith.mulf %64, %79 : vector<1x128xf32>
    %81 = arith.mulf %69, %80 : vector<1x128xf32>
    %82 = arith.subf %65, %81 : vector<1x128xf32>
    %83 = vector.broadcast %80 : vector<1x128xf32> to vector<8x128xf32>
    %84 = arith.mulf %63, %83 : vector<8x128xf32>
    %85 = vector.broadcast %82 : vector<1x128xf32> to vector<8x128xf32>
    %86 = arith.addf %84, %85 : vector<8x128xf32>
    %cst_30 = arith.constant 0.000000e+00 : f32
    %87 = vector.broadcast %cst_30 : f32 to vector<8x128xf32>
    %88 = arith.cmpf oge, %86, %87 : vector<8x128xf32>
    %cst_31 = arith.constant 1.000000e-01 : f32
    %89 = vector.broadcast %cst_31 : f32 to vector<8x128xf32>
    %90 = arith.mulf %89, %86 : vector<8x128xf32>
    %91 = arith.select %88, %86, %90 : vector<8x128xi1>, vector<8x128xf32>
    %92 = arith.addf %31, %91 : vector<8x128xf32>
    %cst_32 = arith.constant 0.000000e+00 : f32
    %93 = vector.broadcast %cst_32 : f32 to vector<8x128xf32>
    %94 = arith.cmpf oge, %92, %93 : vector<8x128xf32>
    %cst_33 = arith.constant 1.000000e-01 : f32
    %95 = vector.broadcast %cst_33 : f32 to vector<8x128xf32>
    %96 = arith.mulf %95, %92 : vector<8x128xf32>
    %97 = arith.select %94, %92, %96 : vector<8x128xi1>, vector<8x128xf32>
    %c0_34 = arith.constant 0 : index
    %c0_35 = arith.constant 0 : index
    %98 = vector.load %arg5[%c0_34, %c0_35] : memref<8x128xf32, #tpu.memory_space<vmem>>, vector<8x128xf32>
    tpu.vector_store %arg5[%c0_34, %c0_35], %97 {strides = array<i32>} : memref<8x128xf32, #tpu.memory_space<vmem>>, vector<8x128xf32>,
    return
  }
}

</mosaic_0001>

<llo_original>
// kernel: tpu_custom_call.1
$region0: #{tpu_custom_call.1}
  #allocation0 [shape = 'u32[]', space=smem, size = 0x4, offset = 0x4, fixed_abs, tag = 'smem constant byte address 0x4 - core index']
  #allocation1 [shape = 'u32[72,128]{1,0:T(1,128)}', space=vmem, size = 0x9000, scoped, tag = 'internal scratch']
  %s0 = inlined_call_operand.hbm [shape: f32[8,128], index: 0, kind: input, shape index: {}]
  %s1 = inlined_call_operand.hbm [shape: f32[128,128], index: 1, kind: input, shape index: {}]
  %s2 = inlined_call_operand.hbm [shape: f32[128,128], index: 2, kind: input, shape index: {}]
  %s3 = inlined_call_operand.hbm [shape: f32[128,128], index: 3, kind: input, shape index: {}]
  %s4 = inlined_call_operand.hbm [shape: f32[8,128], index: 4, kind: input, shape index: {}]
  %s5 = inlined_call_operand.hbm [shape: f32[8,128], index: 5, kind: output, shape index: {}]
  %s6 = sld [smem:[#allocation0]]
  $region50: #{tpu_custom_call.1} parent=0
    _
  %s8 = ssub.s32 1, %s6
  %s9 = scalar_select 0, %s8, %s6
  $region1: #{tpu_custom_call.1} parent=0
    #allocation2 [shape = 'u8[4096]{0}', space=vmem, size = 0x1000, scoped, tag = 'input window, operand 0, single buffered']
    #allocation3 [shape = 's32[1]{0}', space=sflag, size = 0x4, scoped, tag = 'scoped memory for tpu_custom_call.1']
    #allocation4 [shape = 's32[1]{0}', space=sflag, size = 0x4, scoped, tag = 'scoped memory for tpu_custom_call.1']
    #allocation5 [shape = 'u8[65536]{0}', space=vmem, size = 0x10000, scoped, tag = 'input window, operand 1, single buffered']
    #allocation6 [shape = 's32[1]{0}', space=sflag, size = 0x4, scoped, tag = 'scoped memory for tpu_custom_call.1']
    #allocation7 [shape = 'u8[65536]{0}', space=vmem, size = 0x10000, scoped, tag = 'input window, operand 2, single buffered']
    #allocation8 [shape = 'u8[65536]{0}', space=vmem, size = 0x10000, scoped, tag = 'input window, operand 3, single buffered']
    #allocation9 [shape = 's32[1]{0}', space=sflag, size = 0x4, scoped, tag = 'scoped memory for tpu_custom_call.1']
    #allocation10 [shape = 'u8[4096]{0}', space=vmem, size = 0x1000, scoped, tag = 'input window, operand 4, single buffered']
    #allocation11 [shape = 'u8[4096]{0}', space=vmem, size = 0x1000, scoped, tag = 'output window, operand 0, single buffered']
    %10 = vsyncpa [#allocation3], 0
    %11 = vsyncpa [#allocation6], 0
    %12 = vsyncpa [#allocation9], 0
    %13 = vsyncpa [#allocation4], 0
    // Predicated region
    $region2: #{tpu_custom_call.1} parent=1 // pred_check
      _
    $region3: #{tpu_custom_call.1} parent=1 // pred_check_branch
      %15 = sbr.rel (0) target = $region5
    $region4: #{tpu_custom_call.1} parent=1 // pred_region
      %17 = vsyncadd [#allocation3], 0
      %s19 = sshll.u32 %s0, 4
      %s20 = int_to_ptr.hbm [resolvable:$true] %s19
      %s21 = sshll.u32 [#allocation2], 4
      %s22 = int_to_ptr.vmem [resolvable:$true] %s21
      %24 = dma.hbm_to_vmem [thread:$0]  %s20, 128, %s22, [#allocation3]
    $region5: #{tpu_custom_call.1} parent=1 // pred_fallthru
      _
    // Predicated region
    $region6: #{tpu_custom_call.1} parent=1 // pred_check
      _
    $region7: #{tpu_custom_call.1} parent=1 // pred_check_branch
      %26 = sbr.rel (0) target = $region9
    $region8: #{tpu_custom_call.1} parent=1 // pred_region
      %28 = vsyncadd [#allocation6], 0
      %s29 = sshll.u32 %s1, 4
      %s30 = int_to_ptr.hbm [resolvable:$true] %s29
      %s31 = sshll.u32 [#allocation5], 4
      %s32 = int_to_ptr.vmem [resolvable:$true] %s31
      %37 = dma.hbm_to_vmem [thread:$0]  %s30, 2048, %s32, [#allocation6], 128, 128, 8
    $region9: #{tpu_custom_call.1} parent=1 // pred_fallthru
      _
    // Predicated region
    $region10: #{tpu_custom_call.1} parent=1 // pred_check
      _
    $region11: #{tpu_custom_call.1} parent=1 // pred_check_branch
      %39 = sbr.rel (0) target = $region13
    $region12: #{tpu_custom_call.1} parent=1 // pred_region
      %41 = vsyncadd [#allocation6], 0
      %s42 = sshll.u32 %s2, 4
      %s43 = int_to_ptr.hbm [resolvable:$true] %s42
      %s44 = sshll.u32 [#allocation7], 4
      %s45 = int_to_ptr.vmem [resolvable:$true] %s44
      %50 = dma.hbm_to_vmem [thread:$0]  %s43, 2048, %s45, [#allocation6], 128, 128, 8
    $region13: #{tpu_custom_call.1} parent=1 // pred_fallthru
      _
    // Predicated region
    $region14: #{tpu_custom_call.1} parent=1 // pred_check
      _
    $region15: #{tpu_custom_call.1} parent=1 // pred_check_branch
      %52 = sbr.rel (0) target = $region17
    $region16: #{tpu_custom_call.1} parent=1 // pred_region
      %54 = vsyncadd [#allocation9], 0
      %s55 = sshll.u32 %s3, 4
      %s56 = int_to_ptr.hbm [resolvable:$true] %s55
      %s57 = sshll.u32 [#allocation8], 4
      %s58 = int_to_ptr.vmem [resolvable:$true] %s57
      %63 = dma.hbm_to_vmem [thread:$0]  %s56, 2048, %s58, [#allocation9], 128, 128, 8
    $region17: #{tpu_custom_call.1} parent=1 // pred_fallthru
      _
    // Predicated region
    $region18: #{tpu_custom_call.1} parent=1 // pred_check
      _
    $region19: #{tpu_custom_call.1} parent=1 // pred_check_branch
      %65 = sbr.rel (0) target = $region21
    $region20: #{tpu_custom_call.1} parent=1 // pred_region
      %67 = vsyncadd [#allocation9], 0
      %s69 = sshll.u32 %s4, 4
      %s70 = int_to_ptr.hbm [resolvable:$true] %s69
      %s71 = sshll.u32 [#allocation10], 4
      %s72 = int_to_ptr.vmem [resolvable:$true] %s71
      %74 = dma.hbm_to_vmem [thread:$0]  %s70, 128, %s72, [#allocation9]
    $region21: #{tpu_custom_call.1} parent=1 // pred_fallthru
      _
    // Predicated region
    $region22: #{tpu_custom_call.1} parent=1 // pred_check
      _
    $region23: #{tpu_custom_call.1} parent=1 // pred_check_branch
      %76 = sbr.rel (0) target = $region25
    $region24: #{tpu_custom_call.1} parent=1 // pred_region
      %78 = dma.done [#allocation3], 128
    $region25: #{tpu_custom_call.1} parent=1 // pred_fallthru
      _
    // Predicated region
    $region26: #{tpu_custom_call.1} parent=1 // pred_check
      _
    $region27: #{tpu_custom_call.1} parent=1 // pred_check_branch
      %80 = sbr.rel (0) target = $region29
    $region28: #{tpu_custom_call.1} parent=1 // pred_region
      %82 = dma.done [#allocation6], 2048
    $region29: #{tpu_custom_call.1} parent=1 // pred_fallthru
      _
    // Predicated region
    $region30: #{tpu_custom_call.1} parent=1 // pred_check
      _
    $region31: #{tpu_custom_call.1} parent=1 // pred_check_branch
      %84 = sbr.rel (0) target = $region33
    $region32: #{tpu_custom_call.1} parent=1 // pred_region
      %86 = dma.done [#allocation6], 2048
    $region33: #{tpu_custom_call.1} parent=1 // pred_fallthru
      _
    // Predicated region
    $region34: #{tpu_custom_call.1} parent=1 // pred_check
      _
    $region35: #{tpu_custom_call.1} parent=1 // pred_check_branch
      %88 = sbr.rel (0) target = $region37
    $region36: #{tpu_custom_call.1} parent=1 // pred_region
      %90 = dma.done [#allocation9], 2048
    $region37: #{tpu_custom_call.1} parent=1 // pred_fallthru
      _
    // Predicated region
    $region38: #{tpu_custom_call.1} parent=1 // pred_check
      _
    $region39: #{tpu_custom_call.1} parent=1 // pred_check_branch
      %92 = sbr.rel (0) target = $region41
    $region40: #{tpu_custom_call.1} parent=1 // pred_region
      %94 = dma.done [#allocation9], 128
    $region41: #{tpu_custom_call.1} parent=1 // pred_fallthru
      _
    %v95 = vld [vmem:[#allocation2] sm:$0xff]
    %v96 = vld [vmem:[#allocation10] sm:$0xff]
    %v97 = vld [vmem:[#allocation5] sm:$0xff]
    %v98 = vld [vmem:[#allocation5 + $0x8] sm:$0xff]
    %v99 = vld [vmem:[#allocation5 + $0x10] sm:$0xff]
    %v100 = vld [vmem:[#allocation5 + $0x18] sm:$0xff]
    %v101 = vld [vmem:[#allocation5 + $0x20] sm:$0xff]
    %v102 = vld [vmem:[#allocation5 + $0x28] sm:$0xff]
    %v103 = vld [vmem:[#allocation5 + $0x30] sm:$0xff]
    %v104 = vld [vmem:[#allocation5 + $0x38] sm:$0xff]
    %v105 = vld [vmem:[#allocation5 + $0x40] sm:$0xff]
    %v106 = vld [vmem:[#allocation5 + $0x48] sm:$0xff]
    %v107 = vld [vmem:[#allocation5 + $0x50] sm:$0xff]
    %v108 = vld [vmem:[#allocation5 + $0x58] sm:$0xff]
    %v109 = vld [vmem:[#allocation5 + $0x60] sm:$0xff]
    %v110 = vld [vmem:[#allocation5 + $0x68] sm:$0xff]
    %v111 = vld [vmem:[#allocation5 + $0x70] sm:$0xff]
    %v112 = vld [vmem:[#allocation5 + $0x78] sm:$0xff]
    %113 = vmatpush.msra.mxu0 %v112
    %114 = vmatpush.msra.mxu0 %v111
    %115 = vmatpush.msra.mxu0 %v110
    %116 = vmatpush.msra.mxu0 %v109
    %117 = vmatpush.msra.mxu0 %v108
    %118 = vmatpush.msra.mxu0 %v107
    %119 = vmatpush.msra.mxu0 %v106
    %120 = vmatpush.msra.mxu0 %v105
    %121 = vmatpush.msra.mxu0 %v104
    %122 = vmatpush.msra.mxu0 %v103
    %123 = vmatpush.msra.mxu0 %v102
    %124 = vmatpush.msra.mxu0 %v101
    %125 = vmatpush.msra.mxu0 %v100
    %126 = vmatpush.msra.mxu0 %v99
    %127 = vmatpush.msra.mxu0 %v98
    %128 = vmatpush.msra.mxu0 %v97
    %129 = vmatmul.f32.gmra.mxu0 %v95
    %v130 = vpop.f32.mrf.mxu0
    %v131 = vadd.f32 0.0, %v130
    %132 = vdwg.mxu0
    %v133 = vrot.slane %v131, 4
    %v134 = vadd.f32 %v131, %v133
    %v135 = vrot.slane %v134, 2
    %v136 = vadd.f32 %v134, %v135
    %v137 = vrot.slane %v136, 1
    %v138 = vadd.f32 %v136, %v137
    %v139 = vmul.f32 %v138, 0.125
    %v140 = vmul.f32 %v131, %v131
    %v141 = vrot.slane %v140, 4
    %v142 = vadd.f32 %v140, %v141
    %v143 = vrot.slane %v142, 2
    %v144 = vadd.f32 %v142, %v143
    %v145 = vrot.slane %v144, 1
    %v146 = vadd.f32 %v144, %v145
    %v147 = vmul.f32 %v146, 0.125
    %v148 = vmul.f32 %v139, %v139
    %v149 = vsub.f32 %v147, %v148
    %v150 = vadd.f32 %v149, 1e-05
    %v151 = vrsqrt.pop %v150
    %v152 = vmul.f32 %v151, %v150
    %v153 = vmul.f32 %v152, %v151
    %v154 = vmul.f32 0.5, %v153
    %v155 = vsub.f32 1.5, %v154
    %v156 = vmul.f32 %v151, %v155
    %vm157 = vweird.f32 %v150
    %vm158 = vweird.f32 %v151
    %vm159 = vmor %vm157, %vm158
    %v160 = vsel %vm159, %v151, %v156
    %v161 = vmul.f32 %v96, %v160
    %v162 = vmul.f32 %v139, %v161
    %v164 = vrot.slane %v162, 7
    %v166 = vsub.f32 %v96, %v164
    %v167 = vperm.slane %v161, 0
    %v168 = vmul.f32 %v131, %v167
    %v169 = vperm.slane %v166, 1
    %v170 = vadd.f32 %v168, %v169
    %vm171 = vcmp.ge.f32.partialorder %v170, 0.0
    %v172 = vmul.f32 %v170, 0.1
    %v173 = vsel %vm171, %v170, %v172
    %v174 = vld [vmem:[#allocation7] sm:$0xff]
    %v175 = vld [vmem:[#allocation7 + $0x8] sm:$0xff]
    %v176 = vld [vmem:[#allocation7 + $0x10] sm:$0xff]
    %v177 = vld [vmem:[#allocation7 + $0x18] sm:$0xff]
    %v178 = vld [vmem:[#allocation7 + $0x20] sm:$0xff]
    %v179 = vld [vmem:[#allocation7 + $0x28] sm:$0xff]
    %v180 = vld [vmem:[#allocation7 + $0x30] sm:$0xff]
    %v181 = vld [vmem:[#allocation7 + $0x38] sm:$0xff]
    %v182 = vld [vmem:[#allocation7 + $0x40] sm:$0xff]
    %v183 = vld [vmem:[#allocation7 + $0x48] sm:$0xff]
    %v184 = vld [vmem:[#allocation7 + $0x50] sm:$0xff]
    %v185 = vld [vmem:[#allocation7 + $0x58] sm:$0xff]
    %v186 = vld [vmem:[#allocation7 + $0x60] sm:$0xff]
    %v187 = vld [vmem:[#allocation7 + $0x68] sm:$0xff]
    %v188 = vld [vmem:[#allocation7 + $0x70] sm:$0xff]
    %v189 = vld [vmem:[#allocation7 + $0x78] sm:$0xff]
    %190 = vmatpush.msra.mxu0 %v189
    %191 = vmatpush.msra.mxu0 %v188
    %192 = vmatpush.msra.mxu0 %v187
    %193 = vmatpush.msra.mxu0 %v186
    %194 = vmatpush.msra.mxu0 %v185
    %195 = vmatpush.msra.mxu0 %v184
    %196 = vmatpush.msra.mxu0 %v183
    %197 = vmatpush.msra.mxu0 %v182
    %198 = vmatpush.msra.mxu0 %v181
    %199 = vmatpush.msra.mxu0 %v180
    %200 = vmatpush.msra.mxu0 %v179
    %201 = vmatpush.msra.mxu0 %v178
    %202 = vmatpush.msra.mxu0 %v177
    %203 = vmatpush.msra.mxu0 %v176
    %204 = vmatpush.msra.mxu0 %v175
    %205 = vmatpush.msra.mxu0 %v174
    %206 = vmatmul.f32.gmra.mxu0 %v95
    %v207 = vpop.f32.mrf.mxu0
    %v208 = vadd.f32 0.0, %v207
    %209 = vdwg.mxu0
    %v210 = vrot.slane %v208, 4
    %v211 = vadd.f32 %v208, %v210
    %v212 = vrot.slane %v211, 2
    %v213 = vadd.f32 %v211, %v212
    %v214 = vrot.slane %v213, 1
    %v215 = vadd.f32 %v213, %v214
    %v216 = vmul.f32 %v215, 0.125
    %v217 = vmul.f32 %v208, %v208
    %v218 = vrot.slane %v217, 4
    %v219 = vadd.f32 %v217, %v218
    %v220 = vrot.slane %v219, 2
    %v221 = vadd.f32 %v219, %v220
    %v222 = vrot.slane %v221, 1
    %v223 = vadd.f32 %v221, %v222
    %v224 = vmul.f32 %v223, 0.125
    %v225 = vmul.f32 %v216, %v216
    %v226 = vsub.f32 %v224, %v225
    %v227 = vadd.f32 %v226, 1e-05
    %v228 = vrsqrt.pop %v227
    %v229 = vmul.f32 %v228, %v227
    %v230 = vmul.f32 %v229, %v228
    %v231 = vmul.f32 0.5, %v230
    %v232 = vsub.f32 1.5, %v231
    %v233 = vmul.f32 %v228, %v232
    %vm234 = vweird.f32 %v227
    %vm235 = vweird.f32 %v228
    %vm236 = vmor %vm234, %vm235
    %v237 = vsel %vm236, %v228, %v233
    %v238 = vmul.f32 %v96, %v237
    %v239 = vmul.f32 %v216, %v238
    %v241 = vrot.slane %v239, 7
    %v243 = vsub.f32 %v96, %v241
    %v244 = vperm.slane %v238, 2
    %v245 = vmul.f32 %v208, %v244
    %v246 = vperm.slane %v243, 3
    %v247 = vadd.f32 %v245, %v246
    %vm248 = vcmp.ge.f32.partialorder %v247, 0.0
    %v249 = vmul.f32 %v247, 0.1
    %v250 = vsel %vm248, %v247, %v249
    %v251 = vld [vmem:[#allocation8] sm:$0xff]
    %v252 = vld [vmem:[#allocation8 + $0x8] sm:$0xff]
    %v253 = vld [vmem:[#allocation8 + $0x10] sm:$0xff]
    %v254 = vld [vmem:[#allocation8 + $0x18] sm:$0xff]
    %v255 = vld [vmem:[#allocation8 + $0x20] sm:$0xff]
    %v256 = vld [vmem:[#allocation8 + $0x28] sm:$0xff]
    %v257 = vld [vmem:[#allocation8 + $0x30] sm:$0xff]
    %v258 = vld [vmem:[#allocation8 + $0x38] sm:$0xff]
    %v259 = vld [vmem:[#allocation8 + $0x40] sm:$0xff]
    %v260 = vld [vmem:[#allocation8 + $0x48] sm:$0xff]
    %v261 = vld [vmem:[#allocation8 + $0x50] sm:$0xff]
    %v262 = vld [vmem:[#allocation8 + $0x58] sm:$0xff]
    %v263 = vld [vmem:[#allocation8 + $0x60] sm:$0xff]
    %v264 = vld [vmem:[#allocation8 + $0x68] sm:$0xff]
    %v265 = vld [vmem:[#allocation8 + $0x70] sm:$0xff]
    %v266 = vld [vmem:[#allocation8 + $0x78] sm:$0xff]
    %267 = vmatpush.msra.mxu0 %v266
    %268 = vmatpush.msra.mxu0 %v265
    %269 = vmatpush.msra.mxu0 %v264
    %270 = vmatpush.msra.mxu0 %v263
    %271 = vmatpush.msra.mxu0 %v262
    %272 = vmatpush.msra.mxu0 %v261
    %273 = vmatpush.msra.mxu0 %v260
    %274 = vmatpush.msra.mxu0 %v259
    %275 = vmatpush.msra.mxu0 %v258
    %276 = vmatpush.msra.mxu0 %v257
    %277 = vmatpush.msra.mxu0 %v256
    %278 = vmatpush.msra.mxu0 %v255
    %279 = vmatpush.msra.mxu0 %v254
    %280 = vmatpush.msra.mxu0 %v253
    %281 = vmatpush.msra.mxu0 %v252
    %282 = vmatpush.msra.mxu0 %v251
    %283 = vmatmul.f32.gmra.mxu0 %v250
    %v284 = vpop.f32.mrf.mxu0
    %v285 = vadd.f32 0.0, %v284
    %286 = vdwg.mxu0
    %v287 = vrot.slane %v285, 4
    %v288 = vadd.f32 %v285, %v287
    %v289 = vrot.slane %v288, 2
    %v290 = vadd.f32 %v288, %v289
    %v291 = vrot.slane %v290, 1
    %v292 = vadd.f32 %v290, %v291
    %v293 = vmul.f32 %v292, 0.125
    %v294 = vmul.f32 %v285, %v285
    %v295 = vrot.slane %v294, 4
    %v296 = vadd.f32 %v294, %v295
    %v297 = vrot.slane %v296, 2
    %v298 = vadd.f32 %v296, %v297
    %v299 = vrot.slane %v298, 1
    %v300 = vadd.f32 %v298, %v299
    %v301 = vmul.f32 %v300, 0.125
    %v302 = vmul.f32 %v293, %v293
    %v303 = vsub.f32 %v301, %v302
    %v304 = vadd.f32 %v303, 1e-05
    %v305 = vrsqrt.pop %v304
    %v306 = vmul.f32 %v305, %v304
    %v307 = vmul.f32 %v306, %v305
    %v308 = vmul.f32 0.5, %v307
    %v309 = vsub.f32 1.5, %v308
    %v310 = vmul.f32 %v305, %v309
    %vm311 = vweird.f32 %v304
    %vm312 = vweird.f32 %v305
    %vm313 = vmor %vm311, %vm312
    %v314 = vsel %vm313, %v305, %v310
    %v315 = vmul.f32 %v96, %v314
    %v316 = vmul.f32 %v293, %v315
    %v318 = vrot.slane %v316, 7
    %v320 = vsub.f32 %v96, %v318
    %v321 = vperm.slane %v315, 4
    %v322 = vmul.f32 %v285, %v321
    %v323 = vperm.slane %v320, 5
    %v324 = vadd.f32 %v322, %v323
    %vm325 = vcmp.ge.f32.partialorder %v324, 0.0
    %v326 = vmul.f32 %v324, 0.1
    %v327 = vsel %vm325, %v324, %v326
    %v328 = vadd.f32 %v173, %v327
    %vm329 = vcmp.ge.f32.partialorder %v328, 0.0
    %v330 = vmul.f32 %v328, 0.1
    %v331 = vsel %vm329, %v328, %v330
    %332 = vst [vmem:[#allocation11] sm:$0xff] %v331
    // Predicated region
    $region42: #{tpu_custom_call.1} parent=1 // pred_check
      _
    $region43: #{tpu_custom_call.1} parent=1 // pred_check_branch
      %334 = sbr.rel (0) target = $region45
    $region44: #{tpu_custom_call.1} parent=1 // pred_region
      %336 = vsyncadd [#allocation4], 0
      %s338 = sshll.u32 [#allocation11], 4
      %s339 = int_to_ptr.vmem [resolvable:$true] %s338
      %s340 = sshll.u32 %s5, 4
      %s341 = int_to_ptr.hbm [resolvable:$true] %s340
      %343 = dma.vmem_to_hbm [thread:$0]  %s339, 128, %s341, [#allocation4]
    $region45: #{tpu_custom_call.1} parent=1 // pred_fallthru
      _
    // Predicated region
    $region46: #{tpu_custom_call.1} parent=1 // pred_check
      _
    $region47: #{tpu_custom_call.1} parent=1 // pred_check_branch
      %345 = sbr.rel (0) target = $region49
    $region48: #{tpu_custom_call.1} parent=1 // pred_region
      %347 = dma.done [#allocation4], 128
    $region49: #{tpu_custom_call.1} parent=1 // pred_fallthru
      _
    %348 = vsyncpa [#allocation3], 1
    %349 = vsyncpa [#allocation6], 1
    %350 = vsyncpa [#allocation9], 1
    %351 = vsyncpa [#allocation4], 1

</llo_original>
